<compile_context>
chip_gen: v7x
topology: tpu7x:2x2x1
jax: 0.10.0
libtpu: 0.0.40
codegen_flags: <defaults>
</compile_context>

<pallas_src>
import math

import jax
import jax.numpy as jnp
from jax.experimental import pallas as pl
from jax.experimental.pallas import tpu as pltpu


def _round_up(x, m):
    return ((x + m - 1) // m) * m


# ------------------------------ Pallas kernel ------------------------------

def _make_bce_ranking_kernel(tn, total_pixels, eps=0.1):
    """Fused Dist2LogitLayer + BCELoss kernel over `tn`-pixel lane tiles."""
    inv_n = 1.0 / float(total_pixels)

    def kernel(d0_ref, d1_ref, j_ref, w1t_ref, b1_ref, w2t_ref, b2_ref,
               w3_ref, b3_ref, out_ref, acc_ref):
        pid = pl.program_id(0)

        @pl.when(pid == 0)
        def _init():
            acc_ref[...] = jnp.zeros_like(acc_ref)

        d0 = d0_ref[...]                        # (1, tn), pixels on lanes
        d1 = d1_ref[...]                        # (1, tn)
        per = (j_ref[...] + 1.0) * 0.5          # BCE target, (1, tn)

        # --- Dist2LogitLayer input features (torch.cat along channels) ---
        f2 = d0 - d1
        f3 = d0 / (d1 + eps)
        f4 = d1 / (d0 + eps)

        # --- conv1x1 (5 -> chn_mid): 5 rank-1 broadcast mul-adds (VPU) ---
        w1t = w1t_ref[...]                      # (chn_mid, 5)
        h = (w1t[:, 0:1] * d0 + w1t[:, 1:2] * d1 + w1t[:, 2:3] * f2
             + w1t[:, 3:4] * f3 + w1t[:, 4:5] * f4 + b1_ref[...])   # (chn_mid, tn)
        h = jnp.maximum(h, 0.2 * h)             # LeakyReLU(0.2)

        # --- conv1x1 (chn_mid -> chn_mid): bf16 MXU matmul, f32 accumulate ---
        h = jnp.dot(w2t_ref[...].astype(jnp.bfloat16), h.astype(jnp.bfloat16),
                    preferred_element_type=jnp.float32) + b2_ref[...]
        h = jnp.maximum(h, 0.2 * h)             # LeakyReLU(0.2)

        # --- conv1x1 (chn_mid -> 1) + Sigmoid ---
        z = jnp.sum(h * w3_ref[...], axis=0, keepdims=True) + b3_ref[...]   # (1, tn)
        logit = 1.0 / (1.0 + jnp.exp(-z))

        # --- BCELoss (PyTorch clamps the log terms at -100) ---
        log_p = jnp.maximum(jnp.log(logit), -100.0)
        log_1mp = jnp.maximum(jnp.log(1.0 - logit), -100.0)
        bce = -(per * log_p + (1.0 - per) * log_1mp)

        # mask lanes that are padding, accumulate the sum in VMEM scratch
        col = pid * tn + jax.lax.broadcasted_iota(jnp.int32, bce.shape, 1)
        bce = jnp.where(col < total_pixels, bce, 0.0)
        acc_ref[...] = acc_ref[...] + jnp.sum(bce, axis=1, keepdims=True)

        @pl.when(pid == pl.num_programs(0) - 1)
        def _final():
            out_ref[...] = acc_ref[...] * inv_n   # mean over real pixels

    return kernel


def bce_ranking_loss(d0, d1, judge, params, *, tn=2048):
    """BCERankingLoss.forward(d0, d1, judge) -> scalar loss."""
    assert d0.shape == d1.shape == judge.shape
    R = d0.size                                   # N*H*W (channel dim is 1)
    tn = min(tn, _round_up(R, 128))               # lane tile, multiple of 128
    m_pad = _round_up(R, tn)

    def row(x):                                   # (N,1,H,W) -> (1, m_pad), lane-dense
        x = x.reshape(-1).astype(jnp.float32)
        if m_pad > R:
            x = jnp.pad(x, (0, m_pad - R))
        return x.reshape(1, m_pad)

    # kernel-layout weights: channel-major intermediates (chn_mid, tn)
    w1t = jnp.transpose(params["w1"])             # (chn_mid, 5)
    b1 = params["b1"].reshape(-1, 1)              # (chn_mid, 1)
    w2t = jnp.transpose(params["w2"])             # (chn_mid_out, chn_mid_in)
    b2 = params["b2"].reshape(-1, 1)              # (chn_mid, 1)
    w3 = params["w3"].reshape(-1, 1)              # (chn_mid, 1)
    b3 = params["b3"].reshape(1, 1)               # (1, 1)

    lane_spec = pl.BlockSpec((1, tn), lambda i: (0, i))

    def full_spec(a):                             # whole-array, resident block
        return pl.BlockSpec(a.shape, lambda i: (0, 0))

    out = pl.pallas_call(
        _make_bce_ranking_kernel(tn, R),
        out_shape=jax.ShapeDtypeStruct((1, 1), jnp.float32),
        grid=(m_pad // tn,),
        in_specs=[lane_spec, lane_spec, lane_spec,
                  full_spec(w1t), full_spec(b1),
                  full_spec(w2t), full_spec(b2),
                  full_spec(w3), full_spec(b3)],
        out_specs=pl.BlockSpec((1, 1), lambda i: (0, 0)),
        scratch_shapes=[pltpu.VMEM((1, 1), jnp.float32)],
        compiler_params=pltpu.CompilerParams(
            dimension_semantics=("arbitrary",)),   # scalar-reduction axis
    )(row(d0), row(d1), row(judge), w1t, b1, w2t, b2, w3, b3)
    return out[0, 0]


# --------------------------- pure-JAX reference -----------------------------

def _ref_loss(d0, d1, judge, params, eps=0.1):
    per = (judge + 1.0) / 2.0
    feats = jnp.concatenate(
        [d0, d1, d0 - d1, d0 / (d1 + eps), d1 / (d0 + eps)], axis=1)
    x = jnp.transpose(feats, (0, 2, 3, 1)).reshape(-1, 5)
    h = x @ params["w1"] + params["b1"]
    h = jnp.where(h > 0, h, 0.2 * h)
    h = h @ params["w2"] + params["b2"]
    h = jnp.where(h > 0, h, 0.2 * h)
    z = h @ params["w3"] + params["b3"]
    logit = jax.nn.sigmoid(z)
    per_c = jnp.transpose(per, (0, 2, 3, 1)).reshape(-1, 1)
    bce = -(per_c * jnp.maximum(jnp.log(logit), -100.0)
            + (1.0 - per_c) * jnp.maximum(jnp.log(1.0 - logit), -100.0))
    return jnp.mean(bce)


# --------------------------- deterministic params ---------------------------

def init_params(key, chn_mid=32):
    ks = jax.random.split(key, 6)

    def conv1x1(kw, kb, cin, cout):
        bound = 1.0 / math.sqrt(cin)   # PyTorch Conv2d default init bound
        w = jax.random.uniform(kw, (cin, cout), jnp.float32, -bound, bound)
        b = jax.random.uniform(kb, (cout,), jnp.float32, -bound, bound)
        return w, b

    w1, b1 = conv1x1(ks[0], ks[1], 5, chn_mid)
    w2, b2 = conv1x1(ks[2], ks[3], chn_mid, chn_mid)
    w3, b3 = conv1x1(ks[4], ks[5], chn_mid, 1)
    return {"w1": w1, "b1": b1, "w2": w2, "b2": b2, "w3": w3, "b3": b3}


# ----------------------------------- main -----------------------------------

if __name__ == "__main__":
    key = jax.random.PRNGKey(0)
    kp, k0, k1, k2 = jax.random.split(key, 4)
    params = init_params(kp, chn_mid=32)

    # d0/d1 are single-channel non-negative "distance" maps; judge in [-1, 1].
    N, H, W = 2, 16, 16
    d0 = jax.random.uniform(k0, (N, 1, H, W), jnp.float32)
    d1 = jax.random.uniform(k1, (N, 1, H, W), jnp.float32)
    judge = jax.random.uniform(k2, (N, 1, H, W), jnp.float32,
                               minval=-1.0, maxval=1.0)

    # tn=384 at these shapes -> 2 grid steps with padded (masked) lanes, so the
    # multi-step accumulation and padding paths are exercised too.
    loss_fn = jax.jit(lambda a, b, c, p: bce_ranking_loss(a, b, c, p, tn=384))
    loss = jax.block_until_ready(loss_fn(d0, d1, judge, params))

    assert loss.shape == ()
    assert bool(jnp.isfinite(loss))
    # correctness check vs. pure-JAX reference (loose tol: bf16 MXU operands)
    ref = _ref_loss(d0, d1, judge, params)
    assert bool(jnp.allclose(loss, ref, rtol=5e-2, atol=5e-3)), (loss, ref)
    print("KERNEL_OK")
</pallas_src>

<mosaic_0001>
module attributes {stable_mosaic.version = 11 : i64} {
  func.func @kernel(%arg0: i32, %arg1: memref<1x384xf32, #tpu.memory_space<vmem>>, %arg2: memref<1x384xf32, #tpu.memory_space<vmem>>, %arg3: memref<1x384xf32, #tpu.memory_space<vmem>>, %arg4: memref<32x5xf32, #tpu.memory_space<vmem>>, %arg5: memref<32x1xf32, #tpu.memory_space<vmem>>, %arg6: memref<32x32xf32, #tpu.memory_space<vmem>>, %arg7: memref<32x1xf32, #tpu.memory_space<vmem>>, %arg8: memref<32x1xf32, #tpu.memory_space<vmem>>, %arg9: memref<1x1xf32, #tpu.memory_space<vmem>>, %arg10: memref<1x1xf32, #tpu.memory_space<vmem>>, %arg11: memref<1x1xf32, #tpu.memory_space<vmem>>) attributes {dimension_semantics = [#tpu.dimension_semantics<arbitrary>], iteration_bounds = array<i64: 2>, scalar_prefetch = 0 : i64, scratch_operands = 1 : i64, tpu.core_type = #tpu.core_type<tc>, window_params = [{transform_indices = @transform_0, window_bounds = array<i64: 1, 384>}, {transform_indices = @transform_1, window_bounds = array<i64: 1, 384>}, {transform_indices = @transform_2, window_bounds = array<i64: 1, 384>}, {pipeline_mode = #tpu.pipeline_mode<synchronous>, transform_indices = @transform_3, window_bounds = array<i64: 32, 5>}, {pipeline_mode = #tpu.pipeline_mode<synchronous>, transform_indices = @transform_4, window_bounds = array<i64: 32, 1>}, {pipeline_mode = #tpu.pipeline_mode<synchronous>, transform_indices = @transform_5, window_bounds = array<i64: 32, 32>}, {pipeline_mode = #tpu.pipeline_mode<synchronous>, transform_indices = @transform_6, window_bounds = array<i64: 32, 1>}, {pipeline_mode = #tpu.pipeline_mode<synchronous>, transform_indices = @transform_7, window_bounds = array<i64: 32, 1>}, {pipeline_mode = #tpu.pipeline_mode<synchronous>, transform_indices = @transform_8, window_bounds = array<i64: 1, 1>}, {pipeline_mode = #tpu.pipeline_mode<synchronous>, transform_indices = @transform_9, window_bounds = array<i64: 1, 1>}]} {
    %c0_i32 = arith.constant 0 : i32
    %0 = arith.cmpi eq, %arg0, %c0_i32 : i32
    %1 = arith.extui %0 : i1 to i32
    %c0_i32_0 = arith.constant 0 : i32
    %2 = arith.cmpi ne, %1, %c0_i32_0 : i32
    scf.if %2 {
      %cst_40 = arith.constant 0.000000e+00 : f32
      %104 = vector.broadcast %cst_40 : f32 to vector<1x1xf32>
      %c0_41 = arith.constant 0 : index
      %c0_42 = arith.constant 0 : index
      %105 = vector.load %arg11[%c0_41, %c0_42] : memref<1x1xf32, #tpu.memory_space<vmem>>, vector<1x1xf32>
      tpu.vector_store %arg11[%c0_41, %c0_42], %104 {strides = array<i32>} : memref<1x1xf32, #tpu.memory_space<vmem>>, vector<1x1xf32>,
    } else {
    }
    %c0 = arith.constant 0 : index
    %c0_1 = arith.constant 0 : index
    %3 = vector.load %arg1[%c0, %c0_1] : memref<1x384xf32, #tpu.memory_space<vmem>>, vector<1x384xf32>
    %c0_2 = arith.constant 0 : index
    %c0_3 = arith.constant 0 : index
    %4 = vector.load %arg2[%c0_2, %c0_3] : memref<1x384xf32, #tpu.memory_space<vmem>>, vector<1x384xf32>
    %c0_4 = arith.constant 0 : index
    %c0_5 = arith.constant 0 : index
    %5 = vector.load %arg3[%c0_4, %c0_5] : memref<1x384xf32, #tpu.memory_space<vmem>>, vector<1x384xf32>
    %cst = arith.constant 1.000000e+00 : f32
    %6 = vector.broadcast %cst : f32 to vector<1x384xf32>
    %7 = arith.addf %5, %6 : vector<1x384xf32>
    %cst_6 = arith.constant 5.000000e-01 : f32
    %8 = vector.broadcast %cst_6 : f32 to vector<1x384xf32>
    %9 = arith.mulf %7, %8 : vector<1x384xf32>
    %10 = arith.subf %3, %4 : vector<1x384xf32>
    %cst_7 = arith.constant 1.000000e-01 : f32
    %11 = vector.broadcast %cst_7 : f32 to vector<1x384xf32>
    %12 = arith.addf %4, %11 : vector<1x384xf32>
    %13 = arith.divf %3, %12 : vector<1x384xf32>
    %cst_8 = arith.constant 1.000000e-01 : f32
    %14 = vector.broadcast %cst_8 : f32 to vector<1x384xf32>
    %15 = arith.addf %3, %14 : vector<1x384xf32>
    %16 = arith.divf %4, %15 : vector<1x384xf32>
    %c0_9 = arith.constant 0 : index
    %c0_10 = arith.constant 0 : index
    %17 = vector.load %arg4[%c0_9, %c0_10] : memref<32x5xf32, #tpu.memory_space<vmem>>, vector<32x5xf32>
    %18 = vector.extract_strided_slice %17 {offsets = [0, 0], sizes = [32, 1], strides = [1, 1]} : vector<32x5xf32> to vector<32x1xf32>
    %19 = vector.broadcast %18 : vector<32x1xf32> to vector<32x384xf32>
    %20 = vector.broadcast %3 : vector<1x384xf32> to vector<32x384xf32>
    %21 = arith.mulf %19, %20 : vector<32x384xf32>
    %22 = vector.extract_strided_slice %17 {offsets = [0, 1], sizes = [32, 1], strides = [1, 1]} : vector<32x5xf32> to vector<32x1xf32>
    %23 = vector.broadcast %22 : vector<32x1xf32> to vector<32x384xf32>
    %24 = vector.broadcast %4 : vector<1x384xf32> to vector<32x384xf32>
    %25 = arith.mulf %23, %24 : vector<32x384xf32>
    %26 = arith.addf %21, %25 : vector<32x384xf32>
    %27 = vector.extract_strided_slice %17 {offsets = [0, 2], sizes = [32, 1], strides = [1, 1]} : vector<32x5xf32> to vector<32x1xf32>
    %28 = vector.broadcast %27 : vector<32x1xf32> to vector<32x384xf32>
    %29 = vector.broadcast %10 : vector<1x384xf32> to vector<32x384xf32>
    %30 = arith.mulf %28, %29 : vector<32x384xf32>
    %31 = arith.addf %26, %30 : vector<32x384xf32>
    %32 = vector.extract_strided_slice %17 {offsets = [0, 3], sizes = [32, 1], strides = [1, 1]} : vector<32x5xf32> to vector<32x1xf32>
    %33 = vector.broadcast %32 : vector<32x1xf32> to vector<32x384xf32>
    %34 = vector.broadcast %13 : vector<1x384xf32> to vector<32x384xf32>
    %35 = arith.mulf %33, %34 : vector<32x384xf32>
    %36 = arith.addf %31, %35 : vector<32x384xf32>
    %37 = vector.extract_strided_slice %17 {offsets = [0, 4], sizes = [32, 1], strides = [1, 1]} : vector<32x5xf32> to vector<32x1xf32>
    %38 = vector.broadcast %37 : vector<32x1xf32> to vector<32x384xf32>
    %39 = vector.broadcast %16 : vector<1x384xf32> to vector<32x384xf32>
    %40 = arith.mulf %38, %39 : vector<32x384xf32>
    %41 = arith.addf %36, %40 : vector<32x384xf32>
    %c0_11 = arith.constant 0 : index
    %c0_12 = arith.constant 0 : index
    %42 = vector.load %arg5[%c0_11, %c0_12] : memref<32x1xf32, #tpu.memory_space<vmem>>, vector<32x1xf32>
    %43 = vector.broadcast %42 : vector<32x1xf32> to vector<32x384xf32>
    %44 = arith.addf %41, %43 : vector<32x384xf32>
    %cst_13 = arith.constant 2.000000e-01 : f32
    %45 = vector.broadcast %cst_13 : f32 to vector<32x384xf32>
    %46 = arith.mulf %45, %44 : vector<32x384xf32>
    %47 = arith.maximumf %44, %46 : vector<32x384xf32>
    %c0_14 = arith.constant 0 : index
    %c0_15 = arith.constant 0 : index
    %48 = vector.load %arg6[%c0_14, %c0_15] : memref<32x32xf32, #tpu.memory_space<vmem>>, vector<32x32xf32>
    %49 = arith.truncf %48 : vector<32x32xf32> to vector<32x32xbf16>
    %50 = arith.truncf %47 : vector<32x384xf32> to vector<32x384xbf16>
    %cst_16 = arith.constant dense<0.000000e+00> : vector<32x384xf32>
    %51 = tpu.matmul %49, %50, %cst_16 {dimension_numbers = #tpu.dot_dimension_numbers<[1], [0], [0], [1], [0, 0, 1, 1], [], []>} : vector<32x32xbf16>, vector<32x384xbf16>, vector<32x384xf32> -> vector<32x384xf32>
    %c0_17 = arith.constant 0 : index
    %c0_18 = arith.constant 0 : index
    %52 = vector.load %arg7[%c0_17, %c0_18] : memref<32x1xf32, #tpu.memory_space<vmem>>, vector<32x1xf32>
    %53 = vector.broadcast %52 : vector<32x1xf32> to vector<32x384xf32>
    %54 = arith.addf %51, %53 : vector<32x384xf32>
    %cst_19 = arith.constant 2.000000e-01 : f32
    %55 = vector.broadcast %cst_19 : f32 to vector<32x384xf32>
    %56 = arith.mulf %55, %54 : vector<32x384xf32>
    %57 = arith.maximumf %54, %56 : vector<32x384xf32>
    %c0_20 = arith.constant 0 : index
    %c0_21 = arith.constant 0 : index
    %58 = vector.load %arg8[%c0_20, %c0_21] : memref<32x1xf32, #tpu.memory_space<vmem>>, vector<32x1xf32>
    %59 = vector.broadcast %58 : vector<32x1xf32> to vector<32x384xf32>
    %60 = arith.mulf %57, %59 : vector<32x384xf32>
    %cst_22 = arith.constant dense<0.000000e+00> : vector<384xf32>
    %61 = vector.multi_reduction <add>, %60, %cst_22 [0] : vector<32x384xf32> to vector<384xf32>
    %62 = vector.shape_cast %61 : vector<384xf32> to vector<1x384xf32>
    %c0_23 = arith.constant 0 : index
    %c0_24 = arith.constant 0 : index
    %63 = vector.load %arg9[%c0_23, %c0_24] : memref<1x1xf32, #tpu.memory_space<vmem>>, vector<1x1xf32>
    %64 = vector.broadcast %63 : vector<1x1xf32> to vector<1x384xf32>
    %65 = arith.addf %62, %64 : vector<1x384xf32>
    %cst_25 = arith.constant 0.000000e+00 : f32
    %66 = vector.broadcast %cst_25 : f32 to vector<1x384xf32>
    %67 = arith.subf %66, %65 : vector<1x384xf32>
    %68 = math.exp %67 : vector<1x384xf32>
    %cst_26 = arith.constant 1.000000e+00 : f32
    %69 = vector.broadcast %cst_26 : f32 to vector<1x384xf32>
    %70 = arith.addf %69, %68 : vector<1x384xf32>
    %cst_27 = arith.constant 1.000000e+00 : f32
    %71 = vector.broadcast %cst_27 : f32 to vector<1x384xf32>
    %72 = arith.divf %71, %70 : vector<1x384xf32>
    %73 = math.log %72 : vector<1x384xf32>
    %cst_28 = arith.constant -1.000000e+02 : f32
    %74 = vector.broadcast %cst_28 : f32 to vector<1x384xf32>
    %75 = arith.maximumf %73, %74 : vector<1x384xf32>
    %cst_29 = arith.constant 1.000000e+00 : f32
    %76 = vector.broadcast %cst_29 : f32 to vector<1x384xf32>
    %77 = arith.subf %76, %72 : vector<1x384xf32>
    %78 = math.log %77 : vector<1x384xf32>
    %cst_30 = arith.constant -1.000000e+02 : f32
    %79 = vector.broadcast %cst_30 : f32 to vector<1x384xf32>
    %80 = arith.maximumf %78, %79 : vector<1x384xf32>
    %81 = arith.mulf %9, %75 : vector<1x384xf32>
    %cst_31 = arith.constant 1.000000e+00 : f32
    %82 = vector.broadcast %cst_31 : f32 to vector<1x384xf32>
    %83 = arith.subf %82, %9 : vector<1x384xf32>
    %84 = arith.mulf %83, %80 : vector<1x384xf32>
    %85 = arith.addf %81, %84 : vector<1x384xf32>
    %cst_32 = arith.constant 0.000000e+00 : f32
    %86 = vector.broadcast %cst_32 : f32 to vector<1x384xf32>
    %87 = arith.subf %86, %85 : vector<1x384xf32>
    %c384_i32 = arith.constant 384 : i32
    %88 = arith.muli %arg0, %c384_i32 : i32
    %89 = tpu.iota {dimensions = array<i32: 1>} : vector<1x384xi32>
    %90 = vector.broadcast %88 : i32 to vector<1x384xi32>
    %91 = arith.addi %90, %89 : vector<1x384xi32>
    %c512_i32 = arith.constant 512 : i32
    %92 = vector.broadcast %c512_i32 : i32 to vector<1x384xi32>
    %93 = arith.cmpi slt, %91, %92 : vector<1x384xi32>
    %cst_33 = arith.constant 0.000000e+00 : f32
    %94 = vector.broadcast %cst_33 : f32 to vector<1x384xf32>
    %95 = arith.select %93, %87, %94 : vector<1x384xi1>, vector<1x384xf32>
    %c0_34 = arith.constant 0 : index
    %c0_35 = arith.constant 0 : index
    %96 = vector.load %arg11[%c0_34, %c0_35] : memref<1x1xf32, #tpu.memory_space<vmem>>, vector<1x1xf32>
    %cst_36 = arith.constant dense<0.000000e+00> : vector<1xf32>
    %97 = vector.multi_reduction <add>, %95, %cst_36 [1] : vector<1x384xf32> to vector<1xf32>
    %98 = vector.shape_cast %97 : vector<1xf32> to vector<1x1xf32>
    %99 = arith.addf %96, %98 : vector<1x1xf32>
    %c0_37 = arith.constant 0 : index
    %c0_38 = arith.constant 0 : index
    %100 = vector.load %arg11[%c0_37, %c0_38] : memref<1x1xf32, #tpu.memory_space<vmem>>, vector<1x1xf32>
    tpu.vector_store %arg11[%c0_37, %c0_38], %99 {strides = array<i32>} : memref<1x1xf32, #tpu.memory_space<vmem>>, vector<1x1xf32>,
    %c1_i32 = arith.constant 1 : i32
    %101 = arith.cmpi eq, %arg0, %c1_i32 : i32
    %102 = arith.extui %101 : i1 to i32
    %c0_i32_39 = arith.constant 0 : i32
    %103 = arith.cmpi ne, %102, %c0_i32_39 : i32
    scf.if %103 {
      %c0_40 = arith.constant 0 : index
      %c0_41 = arith.constant 0 : index
      %104 = vector.load %arg11[%c0_40, %c0_41] : memref<1x1xf32, #tpu.memory_space<vmem>>, vector<1x1xf32>
      %cst_42 = arith.constant 0.001953125 : f32
      %105 = vector.broadcast %cst_42 : f32 to vector<1x1xf32>
      %106 = arith.mulf %104, %105 : vector<1x1xf32>
      %c0_43 = arith.constant 0 : index
      %c0_44 = arith.constant 0 : index
      %107 = vector.load %arg10[%c0_43, %c0_44] : memref<1x1xf32, #tpu.memory_space<vmem>>, vector<1x1xf32>
      tpu.vector_store %arg10[%c0_43, %c0_44], %106 {strides = array<i32>} : memref<1x1xf32, #tpu.memory_space<vmem>>, vector<1x1xf32>,
    } else {
    }
    return
  }
  func.func @transform_0(%arg0: i32) -> (i32, i32) {
    %c0_i32 = arith.constant 0 : i32
    %c0_i32_0 = arith.constant 0 : i32
    return %c0_i32, %arg0 : i32, i32
  }
  func.func @transform_1(%arg0: i32) -> (i32, i32) {
    %c0_i32 = arith.constant 0 : i32
    %c0_i32_0 = arith.constant 0 : i32
    return %c0_i32, %arg0 : i32, i32
  }
  func.func @transform_2(%arg0: i32) -> (i32, i32) {
    %c0_i32 = arith.constant 0 : i32
    %c0_i32_0 = arith.constant 0 : i32
    return %c0_i32, %arg0 : i32, i32
  }
  func.func @transform_3(%arg0: i32) -> (i32, i32) {
    %c0_i32 = arith.constant 0 : i32
    %c0_i32_0 = arith.constant 0 : i32
    %c0_i32_1 = arith.constant 0 : i32
    return %c0_i32, %c0_i32_0 : i32, i32
  }
  func.func @transform_4(%arg0: i32) -> (i32, i32) {
    %c0_i32 = arith.constant 0 : i32
    %c0_i32_0 = arith.constant 0 : i32
    %c0_i32_1 = arith.constant 0 : i32
    return %c0_i32, %c0_i32_0 : i32, i32
  }
  func.func @transform_5(%arg0: i32) -> (i32, i32) {
    %c0_i32 = arith.constant 0 : i32
    %c0_i32_0 = arith.constant 0 : i32
    %c0_i32_1 = arith.constant 0 : i32
    return %c0_i32, %c0_i32_0 : i32, i32
  }
  func.func @transform_6(%arg0: i32) -> (i32, i32) {
    %c0_i32 = arith.constant 0 : i32
    %c0_i32_0 = arith.constant 0 : i32
    %c0_i32_1 = arith.constant 0 : i32
    return %c0_i32, %c0_i32_0 : i32, i32
  }
  func.func @transform_7(%arg0: i32) -> (i32, i32) {
    %c0_i32 = arith.constant 0 : i32
    %c0_i32_0 = arith.constant 0 : i32
    %c0_i32_1 = arith.constant 0 : i32
    return %c0_i32, %c0_i32_0 : i32, i32
  }
  func.func @transform_8(%arg0: i32) -> (i32, i32) {
    %c0_i32 = arith.constant 0 : i32
    %c0_i32_0 = arith.constant 0 : i32
    %c0_i32_1 = arith.constant 0 : i32
    return %c0_i32, %c0_i32_0 : i32, i32
  }
  func.func @transform_9(%arg0: i32) -> (i32, i32) {
    %c0_i32 = arith.constant 0 : i32
    %c0_i32_0 = arith.constant 0 : i32
    %c0_i32_1 = arith.constant 0 : i32
    return %c0_i32, %c0_i32_0 : i32, i32
  }
}

</mosaic_0001>

<llo_original>
// kernel: _lambda_.1
$region0: #{_lambda_.1}
  #allocation0 [shape = 'u32[]', space=smem, size = 0x4, offset = 0x4, fixed_abs, tag = 'smem constant byte address 0x4 - core index']
  #allocation1 [shape = 'u32[144,128]{1,0:T(1,128)}', space=vmem, size = 0x12000, scoped, tag = 'internal scratch']
  #allocation2 [shape = 'f32[1,1]{1,0:T(1,128)}', space=vmem, size = 0x200, scoped, tag = 'scratch operand']
  #allocation3 [shape = 'f32[1,1]{1,0:T(1,128)S(1)}', space=vmem, size = 0x200, scoped, tag = 'scoped memory for _lambda_.1']
  %s0 = inlined_call_operand.vmem [shape: f32[1,768], index: 0, kind: input, shape index: {}]
  %s1 = inlined_call_operand.vmem [shape: f32[1,768], index: 1, kind: input, shape index: {}]
  %s2 = inlined_call_operand.vmem [shape: f32[1,768], index: 2, kind: input, shape index: {}]
  %s3 = inlined_call_operand.vmem [shape: f32[32,5], index: 3, kind: input, shape index: {}]
  %s4 = inlined_call_operand.vmem [shape: f32[32,1], index: 4, kind: input, shape index: {}]
  %s5 = inlined_call_operand.vmem [shape: f32[32,32], index: 5, kind: input, shape index: {}]
  %s6 = inlined_call_operand.vmem [shape: f32[32,1], index: 6, kind: input, shape index: {}]
  %s7 = inlined_call_operand.vmem [shape: f32[32,1], index: 7, kind: input, shape index: {}]
  %s8 = inlined_call_operand.<no memory space> [shape: f32[1,1], index: 8, kind: input, shape index: {}]
  %s9 = inlined_call_operand.hbm [shape: f32[1,1], index: 9, kind: output, shape index: {}]
  %s10 = sld [smem:[#allocation0]]
  $region77: #{_lambda_.1} parent=0
    _
  %s12 = ssub.s32 1, %s10
  %s13 = scalar_select 0, %s12, %s10
  %v14 = vstv %s8
  %15 = vst [vmem:[#allocation3] sm:$0x1] %v14
  $region1: #{_lambda_.1} parent=0
    #allocation4 [shape = 'u8[512]{0}', space=vmem, size = 0x400, scoped, tag = 'output window, operand 0, single buffered']
    #allocation5 [shape = 's32[2]{0}', space=sflag, size = 0x8, scoped, tag = 'scoped memory for _lambda_.1']
    %16 = vsyncpa [#allocation5], 0
    loop: start=0, step=1, limit=4
    $region2: #{_lambda_.1} parent=1 // loop_pre_header
      _
    $region3: #{_lambda_.1} parent=1 // loop_header
      %s18 = sphi 0, %s22
      %p19 = scmp.ge.s32.totalorder %s18, 4
      %s28 = sphi 0, %s30
      %s31 = sphi 0, %s28
      %s32 = sphi 0, %s31
      %s48 = sphi 0, %s32
      %s54 = sphi 0, %s56
      %s57 = sphi 0, %s54
      %s58 = sphi 0, %s57
      %s74 = sphi 0, %s58
      %s80 = sphi 0, %s82
      %s83 = sphi 0, %s80
      %s84 = sphi 0, %s83
      %s100 = sphi 0, %s84
      %s104 = sphi 0, %s104
      %s106 = sphi 0, %s104
      %s107 = sphi 0, %s106
      %s121 = sphi 0, %s107
      %s125 = sphi 0, %s125
      %s127 = sphi 0, %s125
      %s128 = sphi 0, %s127
      %s142 = sphi 0, %s128
      %s146 = sphi 0, %s146
      %s148 = sphi 0, %s146
      %s149 = sphi 0, %s148
      %s163 = sphi 0, %s149
      %s167 = sphi 0, %s167
      %s169 = sphi 0, %s167
      %s170 = sphi 0, %s169
      %s184 = sphi 0, %s170
      %s188 = sphi 0, %s188
      %s190 = sphi 0, %s188
      %s191 = sphi 0, %s190
      %s205 = sphi 0, %s191
      %s209 = sphi 0, %s209
      %s211 = sphi 0, %s209
      %s212 = sphi 0, %s211
      %s226 = sphi 0, %s212
      %s230 = sphi 0, %s230
      %s232 = sphi 0, %s230
      %s233 = sphi 0, %s232
      %s247 = sphi 0, %s233
    $region4: #{_lambda_.1} parent=1 // loop_header_branch
      %21 = sbr.rel (%p19) target = $region8
    $region5: #{_lambda_.1} parent=1 // loop_body
      %s23 = ssub.s32 %s18, 1
      %s24 = ssub.s32 %s18, 2
      %s25 = sadd.s32 %s18, 1
      %s26 = ssub.s32 %s18, %s25
      %p27 = scmp.eq.s32.totalorder %s26, 0
      %s29 = sadd.s32 %s28, 1
      %s30 = scalar_select %p27, %s28, %s29
      %p33 = pneg %p27
      %p34 = scmp.eq.s32.totalorder %s18, 1
      %p35 = por %p33, %p34
      %p36 = scmp.ne.s32.totalorder %s28, %s31
      %p37 = scmp.eq.s32.totalorder %s18, 0
      %p38 = por %p36, %p37
      %p39 = scmp.ne.s32.totalorder %s28, %s31
      %p40 = scmp.eq.s32.totalorder %s23, 1
      %p41 = por %p39, %p40
      %p42 = scmp.ne.s32.totalorder %s31, %s32
      %p43 = scmp.eq.s32.totalorder %s23, 0
      %p44 = por %p42, %p43
      %p45 = scmp.ne.s32.totalorder %s31, %s32
      %p46 = scmp.eq.s32.totalorder %s24, 1
      %p47 = por %p45, %p46
      %p49 = scmp.ne.s32.totalorder %s32, %s48
      %p50 = scmp.eq.s32.totalorder %s24, 0
      %p51 = por %p49, %p50
      %s52 = ssub.s32 %s18, %s25
      %p53 = scmp.eq.s32.totalorder %s52, 0
      %s55 = sadd.s32 %s54, 1
      %s56 = scalar_select %p53, %s54, %s55
      %p59 = pneg %p53
      %p60 = scmp.eq.s32.totalorder %s18, 1
      %p61 = por %p59, %p60
      %p62 = scmp.ne.s32.totalorder %s54, %s57
      %p63 = scmp.eq.s32.totalorder %s18, 0
      %p64 = por %p62, %p63
      %p65 = scmp.ne.s32.totalorder %s54, %s57
      %p66 = scmp.eq.s32.totalorder %s23, 1
      %p67 = por %p65, %p66
      %p68 = scmp.ne.s32.totalorder %s57, %s58
      %p69 = scmp.eq.s32.totalorder %s23, 0
      %p70 = por %p68, %p69
      %p71 = scmp.ne.s32.totalorder %s57, %s58
      %p72 = scmp.eq.s32.totalorder %s24, 1
      %p73 = por %p71, %p72
      %p75 = scmp.ne.s32.totalorder %s58, %s74
      %p76 = scmp.eq.s32.totalorder %s24, 0
      %p77 = por %p75, %p76
      %s78 = ssub.s32 %s18, %s25
      %p79 = scmp.eq.s32.totalorder %s78, 0
      %s81 = sadd.s32 %s80, 1
      %s82 = scalar_select %p79, %s80, %s81
      %p85 = pneg %p79
      %p86 = scmp.eq.s32.totalorder %s18, 1
      %p87 = por %p85, %p86
      %p88 = scmp.ne.s32.totalorder %s80, %s83
      %p89 = scmp.eq.s32.totalorder %s18, 0
      %p90 = por %p88, %p89
      %p91 = scmp.ne.s32.totalorder %s80, %s83
      %p92 = scmp.eq.s32.totalorder %s23, 1
      %p93 = por %p91, %p92
      %p94 = scmp.ne.s32.totalorder %s83, %s84
      %p95 = scmp.eq.s32.totalorder %s23, 0
      %p96 = por %p94, %p95
      %p97 = scmp.ne.s32.totalorder %s83, %s84
      %p98 = scmp.eq.s32.totalorder %s24, 1
      %p99 = por %p97, %p98
      %p101 = scmp.ne.s32.totalorder %s84, %s100
      %p102 = scmp.eq.s32.totalorder %s24, 0
      %p103 = por %p101, %p102
      %s105 = sadd.s32 %s104, 1
      %p108 = scmp.eq.s32.totalorder %s18, 1
      %p109 = scmp.ne.s32.totalorder %s104, %s106
      %p110 = scmp.eq.s32.totalorder %s18, 0
      %p111 = por %p109, %p110
      %p112 = scmp.ne.s32.totalorder %s104, %s106
      %p113 = scmp.eq.s32.totalorder %s23, 1
      %p114 = por %p112, %p113
      %p115 = scmp.ne.s32.totalorder %s106, %s107
      %p116 = scmp.eq.s32.totalorder %s23, 0
      %p117 = por %p115, %p116
      %p118 = scmp.ne.s32.totalorder %s106, %s107
      %p119 = scmp.eq.s32.totalorder %s24, 1
      %p120 = por %p118, %p119
      %p122 = scmp.ne.s32.totalorder %s107, %s121
      %p123 = scmp.eq.s32.totalorder %s24, 0
      %p124 = por %p122, %p123
      %s126 = sadd.s32 %s125, 1
      %p129 = scmp.eq.s32.totalorder %s18, 1
      %p130 = scmp.ne.s32.totalorder %s125, %s127
      %p131 = scmp.eq.s32.totalorder %s18, 0
      %p132 = por %p130, %p131
      %p133 = scmp.ne.s32.totalorder %s125, %s127
      %p134 = scmp.eq.s32.totalorder %s23, 1
      %p135 = por %p133, %p134
      %p136 = scmp.ne.s32.totalorder %s127, %s128
      %p137 = scmp.eq.s32.totalorder %s23, 0
      %p138 = por %p136, %p137
      %p139 = scmp.ne.s32.totalorder %s127, %s128
      %p140 = scmp.eq.s32.totalorder %s24, 1
      %p141 = por %p139, %p140
      %p143 = scmp.ne.s32.totalorder %s128, %s142
      %p144 = scmp.eq.s32.totalorder %s24, 0
      %p145 = por %p143, %p144
      %s147 = sadd.s32 %s146, 1
      %p150 = scmp.eq.s32.totalorder %s18, 1
      %p151 = scmp.ne.s32.totalorder %s146, %s148
      %p152 = scmp.eq.s32.totalorder %s18, 0
      %p153 = por %p151, %p152
      %p154 = scmp.ne.s32.totalorder %s146, %s148
      %p155 = scmp.eq.s32.totalorder %s23, 1
      %p156 = por %p154, %p155
      %p157 = scmp.ne.s32.totalorder %s148, %s149
      %p158 = scmp.eq.s32.totalorder %s23, 0
      %p159 = por %p157, %p158
      %p160 = scmp.ne.s32.totalorder %s148, %s149
      %p161 = scmp.eq.s32.totalorder %s24, 1
      %p162 = por %p160, %p161
      %p164 = scmp.ne.s32.totalorder %s149, %s163
      %p165 = scmp.eq.s32.totalorder %s24, 0
      %p166 = por %p164, %p165
      %s168 = sadd.s32 %s167, 1
      %p171 = scmp.eq.s32.totalorder %s18, 1
      %p172 = scmp.ne.s32.totalorder %s167, %s169
      %p173 = scmp.eq.s32.totalorder %s18, 0
      %p174 = por %p172, %p173
      %p175 = scmp.ne.s32.totalorder %s167, %s169
      %p176 = scmp.eq.s32.totalorder %s23, 1
      %p177 = por %p175, %p176
      %p178 = scmp.ne.s32.totalorder %s169, %s170
      %p179 = scmp.eq.s32.totalorder %s23, 0
      %p180 = por %p178, %p179
      %p181 = scmp.ne.s32.totalorder %s169, %s170
      %p182 = scmp.eq.s32.totalorder %s24, 1
      %p183 = por %p181, %p182
      %p185 = scmp.ne.s32.totalorder %s170, %s184
      %p186 = scmp.eq.s32.totalorder %s24, 0
      %p187 = por %p185, %p186
      %s189 = sadd.s32 %s188, 1
      %p192 = scmp.eq.s32.totalorder %s18, 1
      %p193 = scmp.ne.s32.totalorder %s188, %s190
      %p194 = scmp.eq.s32.totalorder %s18, 0
      %p195 = por %p193, %p194
      %p196 = scmp.ne.s32.totalorder %s188, %s190
      %p197 = scmp.eq.s32.totalorder %s23, 1
      %p198 = por %p196, %p197
      %p199 = scmp.ne.s32.totalorder %s190, %s191
      %p200 = scmp.eq.s32.totalorder %s23, 0
      %p201 = por %p199, %p200
      %p202 = scmp.ne.s32.totalorder %s190, %s191
      %p203 = scmp.eq.s32.totalorder %s24, 1
      %p204 = por %p202, %p203
      %p206 = scmp.ne.s32.totalorder %s191, %s205
      %p207 = scmp.eq.s32.totalorder %s24, 0
      %p208 = por %p206, %p207
      %s210 = sadd.s32 %s209, 1
      %p213 = scmp.eq.s32.totalorder %s18, 1
      %p214 = scmp.ne.s32.totalorder %s209, %s211
      %p215 = scmp.eq.s32.totalorder %s18, 0
      %p216 = por %p214, %p215
      %p217 = scmp.ne.s32.totalorder %s209, %s211
      %p218 = scmp.eq.s32.totalorder %s23, 1
      %p219 = por %p217, %p218
      %p220 = scmp.ne.s32.totalorder %s211, %s212
      %p221 = scmp.eq.s32.totalorder %s23, 0
      %p222 = por %p220, %p221
      %p223 = scmp.ne.s32.totalorder %s211, %s212
      %p224 = scmp.eq.s32.totalorder %s24, 1
      %p225 = por %p223, %p224
      %p227 = scmp.ne.s32.totalorder %s212, %s226
      %p228 = scmp.eq.s32.totalorder %s24, 0
      %p229 = por %p227, %p228
      %s231 = sadd.s32 %s230, 1
      %p234 = scmp.eq.s32.totalorder %s18, 1
      %p235 = scmp.ne.s32.totalorder %s230, %s232
      %p236 = scmp.eq.s32.totalorder %s18, 0
      %p237 = por %p235, %p236
      %p238 = scmp.ne.s32.totalorder %s230, %s232
      %p239 = scmp.eq.s32.totalorder %s23, 1
      %p240 = por %p238, %p239
      %p241 = scmp.ne.s32.totalorder %s232, %s233
      %p242 = scmp.eq.s32.totalorder %s23, 0
      %p243 = por %p241, %p242
      %p244 = scmp.ne.s32.totalorder %s232, %s233
      %p245 = scmp.eq.s32.totalorder %s24, 1
      %p246 = por %p244, %p245
      %p248 = scmp.ne.s32.totalorder %s233, %s247
      %p249 = scmp.eq.s32.totalorder %s24, 0
      %p250 = por %p248, %p249
      %p251 = scmp.le.s32.totalorder 1, %s18
      %p252 = scmp.lt.s32.totalorder %s18, 3
      %p253 = pnand %p251, %p252
      %p254 = pneg %p253
      // Predicated region
      $region9: #{_lambda_.1} parent=5 // pred_check
        _
      $region10: #{_lambda_.1} parent=5 // pred_check_branch
        %256 = sbr.rel (%p253) target = $region12
      $region11: #{_lambda_.1} parent=5 // pred_region
        %s257 = ssub.s32 %s18, 1
        // Predicated region
        $region13: #{_lambda_.1} parent=11 // pred_check
          %p258 = pneg %p117
        $region14: #{_lambda_.1} parent=11 // pred_check_branch
          %260 = sbr.rel (%p258) target = $region16
        $region15: #{_lambda_.1} parent=11 // pred_region
          _
        $region16: #{_lambda_.1} parent=11 // pred_fallthru
          _
        // Predicated region
        $region17: #{_lambda_.1} parent=11 // pred_check
          %p261 = pneg %p138
        $region18: #{_lambda_.1} parent=11 // pred_check_branch
          %263 = sbr.rel (%p261) target = $region20
        $region19: #{_lambda_.1} parent=11 // pred_region
          _
        $region20: #{_lambda_.1} parent=11 // pred_fallthru
          _
        // Predicated region
        $region21: #{_lambda_.1} parent=11 // pred_check
          %p264 = pneg %p159
        $region22: #{_lambda_.1} parent=11 // pred_check_branch
          %266 = sbr.rel (%p264) target = $region24
        $region23: #{_lambda_.1} parent=11 // pred_region
          _
        $region24: #{_lambda_.1} parent=11 // pred_fallthru
          _
        // Predicated region
        $region25: #{_lambda_.1} parent=11 // pred_check
          %p267 = pneg %p180
        $region26: #{_lambda_.1} parent=11 // pred_check_branch
          %269 = sbr.rel (%p267) target = $region28
        $region27: #{_lambda_.1} parent=11 // pred_region
          _
        $region28: #{_lambda_.1} parent=11 // pred_fallthru
          _
        // Predicated region
        $region29: #{_lambda_.1} parent=11 // pred_check
          %p270 = pneg %p201
        $region30: #{_lambda_.1} parent=11 // pred_check_branch
          %272 = sbr.rel (%p270) target = $region32
        $region31: #{_lambda_.1} parent=11 // pred_region
          _
        $region32: #{_lambda_.1} parent=11 // pred_fallthru
          _
        // Predicated region
        $region33: #{_lambda_.1} parent=11 // pred_check
          %p273 = pneg %p222
        $region34: #{_lambda_.1} parent=11 // pred_check_branch
          %275 = sbr.rel (%p273) target = $region36
        $region35: #{_lambda_.1} parent=11 // pred_region
          _
        $region36: #{_lambda_.1} parent=11 // pred_fallthru
          _
      $region12: #{_lambda_.1} parent=5 // pred_fallthru
        _
      %p276 = scmp.lt.s32.totalorder %s18, 2
      // Predicated region
      $region37: #{_lambda_.1} parent=5 // pred_check
        %p277 = pneg %p276
      $region38: #{_lambda_.1} parent=5 // pred_check_branch
        %279 = sbr.rel (%p277) target = $region40
      $region39: #{_lambda_.1} parent=5 // pred_region
        // Predicated region
        $region41: #{_lambda_.1} parent=39 // pred_check
          %p280 = pneg %p38
        $region42: #{_lambda_.1} parent=39 // pred_check_branch
          %282 = sbr.rel (%p280) target = $region44
        $region43: #{_lambda_.1} parent=39 // pred_region
          %s283 = smul.u32 3, %s18
          %p284 = scmp.lt.s32.totalorder %s283, 5
          %s285 = scalar_select %p284, %s283, 5
          %s286 = scalar_lea.vmem %s0, %s285
          %s287 = smul.u32 3, %s18
        $region44: #{_lambda_.1} parent=39 // pred_fallthru
          _
        // Predicated region
        $region45: #{_lambda_.1} parent=39 // pred_check
          %p288 = pneg %p64
        $region46: #{_lambda_.1} parent=39 // pred_check_branch
          %290 = sbr.rel (%p288) target = $region48
        $region47: #{_lambda_.1} parent=39 // pred_region
          %s291 = smul.u32 3, %s18
          %p292 = scmp.lt.s32.totalorder %s291, 5
          %s293 = scalar_select %p292, %s291, 5
          %s294 = scalar_lea.vmem %s1, %s293
          %s295 = smul.u32 3, %s18
        $region48: #{_lambda_.1} parent=39 // pred_fallthru
          _
        // Predicated region
        $region49: #{_lambda_.1} parent=39 // pred_check
          %p296 = pneg %p90
        $region50: #{_lambda_.1} parent=39 // pred_check_branch
          %298 = sbr.rel (%p296) target = $region52
        $region51: #{_lambda_.1} parent=39 // pred_region
          %s299 = smul.u32 3, %s18
          %p300 = scmp.lt.s32.totalorder %s299, 5
          %s301 = scalar_select %p300, %s299, 5
          %s302 = scalar_lea.vmem %s2, %s301
          %s303 = smul.u32 3, %s18
        $region52: #{_lambda_.1} parent=39 // pred_fallthru
          _
      $region40: #{_lambda_.1} parent=5 // pred_fallthru
        _
      %p304 = scmp.le.s32.totalorder 1, %s18
      %p305 = scmp.lt.s32.totalorder %s18, 3
      %p306 = pnand %p304, %p305
      %p307 = pneg %p306
      // Predicated region
      $region53: #{_lambda_.1} parent=5 // pred_check
        _
      $region54: #{_lambda_.1} parent=5 // pred_check_branch
        %309 = sbr.rel (%p306) target = $region56
      $region55: #{_lambda_.1} parent=5 // pred_region
        %s310 = ssub.s32 %s18, 1
        %s311 = smul.u32 3, %s23
        %p312 = scmp.lt.s32.totalorder %s311, 5
        %s313 = scalar_select %p312, %s311, 5
        %s314 = scalar_lea.vmem %s0, %s313
        %p315 = pneg %p44
        %p316 = pneg %p41
        %s317 = smul.u32 3, %s23
        %p318 = scmp.lt.s32.totalorder %s317, 5
        %s319 = scalar_select %p318, %s317, 5
        %s320 = scalar_lea.vmem %s1, %s319
        %p321 = pneg %p70
        %p322 = pneg %p67
        %s323 = smul.u32 3, %s23
        %p324 = scmp.lt.s32.totalorder %s323, 5
        %s325 = scalar_select %p324, %s323, 5
        %s326 = scalar_lea.vmem %s2, %s325
        %p327 = pneg %p96
        %p328 = pneg %p93
        %p329 = pneg %p117
        %p330 = pneg %p114
        %p331 = pneg %p138
        %p332 = pneg %p135
        %p333 = pneg %p159
        %p334 = pneg %p156
        %p335 = pneg %p180
        %p336 = pneg %p177
        %p337 = pneg %p201
        %p338 = pneg %p198
        %p339 = pneg %p222
        %p340 = pneg %p219
        %p341 = pneg %p243
        %p342 = pneg %p240
        %s343 = smul.u32 3, %s23
        %p344 = scmp.lt.s32.totalorder %s343, 5
        %s345 = scalar_select %p344, %s343, 5
        %s346 = scalar_lea.vmem %s0, %s345
        %s347 = smul.u32 3, %s23
        %s348 = smul.u32 3, %s23
        %p349 = scmp.lt.s32.totalorder %s348, 5
        %s350 = scalar_select %p349, %s348, 5
        %s351 = scalar_lea.vmem %s1, %s350
        %s352 = smul.u32 3, %s23
        %s353 = smul.u32 3, %s23
        %p354 = scmp.lt.s32.totalorder %s353, 5
        %s355 = scalar_select %p354, %s353, 5
        %s356 = scalar_lea.vmem %s2, %s355
        %s357 = smul.u32 3, %s23
        %p359 = scmp.eq.s32.totalorder %s23, 0
        // Predicated region
        $region57: #{_lambda_.1} parent=55 // pred_check
          %p360 = pneg %p359
        $region58: #{_lambda_.1} parent=55 // pred_check_branch
          %362 = sbr.rel (%p360) target = $region60
        $region59: #{_lambda_.1} parent=55 // pred_region
          %vm363 = vcmask 0
          %364 = vst.msk [vmem:[#allocation2] sm:$0x1] %vm363, 0.0
        $region60: #{_lambda_.1} parent=55 // pred_fallthru
          _
        %v365 = vld [vmem:[%s346] sm:$0x7]
        %v366 = vld [vmem:[%s351] sm:$0x7]
        %v367 = vld [vmem:[%s356] sm:$0x7]
        %v368 = vadd.f32 %v367, 1.0
        %v369 = vmul.f32 %v368, 0.5
        %v370 = vsub.f32 %v365, %v366
        %v371 = vadd.f32 %v366, 0.1
        %v372 = vrcp.pop %v371
        %v373 = vmul.f32 %v365, %v372
        %v374 = vadd.f32 %v365, 0.1
        %v375 = vrcp.pop %v374
        %v376 = vmul.f32 %v366, %v375
        %v377 = vld [vmem:[%s3] sm:$0xff]
        %v378 = vld [vmem:[%s3 + $0x8] sm:$0xff]
        %v379 = vld [vmem:[%s3 + $0x10] sm:$0xff]
        %v380 = vld [vmem:[%s3 + $0x18] sm:$0xff]
        %382 = vset.pattern.permute.xlu0 0
        %383 = vperm.xlu0 %382, %v377
        %v384 = vpop.permute.xlu0 %383
        %387 = vset.pattern.permute.xlu0 0
        %388 = vperm.xlu0 %387, %v378
        %v389 = vpop.permute.xlu0 %388
        %392 = vset.pattern.permute.xlu0 0
        %393 = vperm.xlu0 %392, %v379
        %v394 = vpop.permute.xlu0 %393
        %397 = vset.pattern.permute.xlu0 0
        %398 = vperm.xlu0 %397, %v380
        %v399 = vpop.permute.xlu0 %398
        %v402 = vlaneseq
        %v403 = vshrl.u32 %v402, 7
        %v404 = vsub.s32 0, %v403
        %v405 = vrot.slane %v365, %v404
        %v406 = vlaneseq
        %v407 = vshrl.u32 %v406, 7
        %v408 = vsub.s32 1, %v407
        %v409 = vrot.slane %v365, %v408
        %v410 = vlaneseq
        %v411 = vshrl.u32 %v410, 7
        %v412 = vsub.s32 2, %v411
        %v413 = vrot.slane %v365, %v412
        %v417 = vmul.f32 %v384, %v405
        %v418 = vmul.f32 %v384, %v409
        %v419 = vmul.f32 %v384, %v413
        %v420 = vmul.f32 %v389, %v405
        %v421 = vmul.f32 %v389, %v409
        %v422 = vmul.f32 %v389, %v413
        %v423 = vmul.f32 %v394, %v405
        %v424 = vmul.f32 %v394, %v409
        %v425 = vmul.f32 %v394, %v413
        %v426 = vmul.f32 %v399, %v405
        %v427 = vmul.f32 %v399, %v409
        %v428 = vmul.f32 %v399, %v413
        %429 = vset.pattern.permute.xlu0 1
        %430 = vperm.xlu0 %429, %v377
        %v431 = vpop.permute.xlu0 %430
        %433 = vset.pattern.permute.xlu0 1
        %434 = vperm.xlu0 %433, %v378
        %v435 = vpop.permute.xlu0 %434
        %437 = vset.pattern.permute.xlu0 1
        %438 = vperm.xlu0 %437, %v379
        %v439 = vpop.permute.xlu0 %438
        %441 = vset.pattern.permute.xlu0 1
        %442 = vperm.xlu0 %441, %v380
        %v443 = vpop.permute.xlu0 %442
        %v446 = vlaneseq
        %v447 = vshrl.u32 %v446, 7
        %v448 = vsub.s32 0, %v447
        %v449 = vrot.slane %v366, %v448
        %v450 = vlaneseq
        %v451 = vshrl.u32 %v450, 7
        %v452 = vsub.s32 1, %v451
        %v453 = vrot.slane %v366, %v452
        %v454 = vlaneseq
        %v455 = vshrl.u32 %v454, 7
        %v456 = vsub.s32 2, %v455
        %v457 = vrot.slane %v366, %v456
        %v461 = vmul.f32 %v431, %v449
        %v462 = vmul.f32 %v431, %v453
        %v463 = vmul.f32 %v431, %v457
        %v464 = vmul.f32 %v435, %v449
        %v465 = vmul.f32 %v435, %v453
        %v466 = vmul.f32 %v435, %v457
        %v467 = vmul.f32 %v439, %v449
        %v468 = vmul.f32 %v439, %v453
        %v469 = vmul.f32 %v439, %v457
        %v470 = vmul.f32 %v443, %v449
        %v471 = vmul.f32 %v443, %v453
        %v472 = vmul.f32 %v443, %v457
        %v473 = vadd.f32 %v417, %v461
        %v474 = vadd.f32 %v418, %v462
        %v475 = vadd.f32 %v419, %v463
        %v476 = vadd.f32 %v420, %v464
        %v477 = vadd.f32 %v421, %v465
        %v478 = vadd.f32 %v422, %v466
        %v479 = vadd.f32 %v423, %v467
        %v480 = vadd.f32 %v424, %v468
        %v481 = vadd.f32 %v425, %v469
        %v482 = vadd.f32 %v426, %v470
        %v483 = vadd.f32 %v427, %v471
        %v484 = vadd.f32 %v428, %v472
        %485 = vset.pattern.permute.xlu0 2
        %486 = vperm.xlu0 %485, %v377
        %v487 = vpop.permute.xlu0 %486
        %489 = vset.pattern.permute.xlu0 2
        %490 = vperm.xlu0 %489, %v378
        %v491 = vpop.permute.xlu0 %490
        %493 = vset.pattern.permute.xlu0 2
        %494 = vperm.xlu0 %493, %v379
        %v495 = vpop.permute.xlu0 %494
        %497 = vset.pattern.permute.xlu0 2
        %498 = vperm.xlu0 %497, %v380
        %v499 = vpop.permute.xlu0 %498
        %v502 = vlaneseq
        %v503 = vshrl.u32 %v502, 7
        %v504 = vsub.s32 0, %v503
        %v505 = vrot.slane %v370, %v504
        %v506 = vlaneseq
        %v507 = vshrl.u32 %v506, 7
        %v508 = vsub.s32 1, %v507
        %v509 = vrot.slane %v370, %v508
        %v510 = vlaneseq
        %v511 = vshrl.u32 %v510, 7
        %v512 = vsub.s32 2, %v511
        %v513 = vrot.slane %v370, %v512
        %v517 = vmul.f32 %v487, %v505
        %v518 = vmul.f32 %v487, %v509
        %v519 = vmul.f32 %v487, %v513
        %v520 = vmul.f32 %v491, %v505
        %v521 = vmul.f32 %v491, %v509
        %v522 = vmul.f32 %v491, %v513
        %v523 = vmul.f32 %v495, %v505
        %v524 = vmul.f32 %v495, %v509
        %v525 = vmul.f32 %v495, %v513
        %v526 = vmul.f32 %v499, %v505
        %v527 = vmul.f32 %v499, %v509
        %v528 = vmul.f32 %v499, %v513
        %v529 = vadd.f32 %v473, %v517
        %v530 = vadd.f32 %v474, %v518
        %v531 = vadd.f32 %v475, %v519
        %v532 = vadd.f32 %v476, %v520
        %v533 = vadd.f32 %v477, %v521
        %v534 = vadd.f32 %v478, %v522
        %v535 = vadd.f32 %v479, %v523
        %v536 = vadd.f32 %v480, %v524
        %v537 = vadd.f32 %v481, %v525
        %v538 = vadd.f32 %v482, %v526
        %v539 = vadd.f32 %v483, %v527
        %v540 = vadd.f32 %v484, %v528
        %541 = vset.pattern.permute.xlu0 3
        %542 = vperm.xlu0 %541, %v377
        %v543 = vpop.permute.xlu0 %542
        %545 = vset.pattern.permute.xlu0 3
        %546 = vperm.xlu0 %545, %v378
        %v547 = vpop.permute.xlu0 %546
        %549 = vset.pattern.permute.xlu0 3
        %550 = vperm.xlu0 %549, %v379
        %v551 = vpop.permute.xlu0 %550
        %553 = vset.pattern.permute.xlu0 3
        %554 = vperm.xlu0 %553, %v380
        %v555 = vpop.permute.xlu0 %554
        %v558 = vlaneseq
        %v559 = vshrl.u32 %v558, 7
        %v560 = vsub.s32 0, %v559
        %v561 = vrot.slane %v373, %v560
        %v562 = vlaneseq
        %v563 = vshrl.u32 %v562, 7
        %v564 = vsub.s32 1, %v563
        %v565 = vrot.slane %v373, %v564
        %v566 = vlaneseq
        %v567 = vshrl.u32 %v566, 7
        %v568 = vsub.s32 2, %v567
        %v569 = vrot.slane %v373, %v568
        %v573 = vmul.f32 %v543, %v561
        %v574 = vmul.f32 %v543, %v565
        %v575 = vmul.f32 %v543, %v569
        %v576 = vmul.f32 %v547, %v561
        %v577 = vmul.f32 %v547, %v565
        %v578 = vmul.f32 %v547, %v569
        %v579 = vmul.f32 %v551, %v561
        %v580 = vmul.f32 %v551, %v565
        %v581 = vmul.f32 %v551, %v569
        %v582 = vmul.f32 %v555, %v561
        %v583 = vmul.f32 %v555, %v565
        %v584 = vmul.f32 %v555, %v569
        %v585 = vadd.f32 %v529, %v573
        %v586 = vadd.f32 %v530, %v574
        %v587 = vadd.f32 %v531, %v575
        %v588 = vadd.f32 %v532, %v576
        %v589 = vadd.f32 %v533, %v577
        %v590 = vadd.f32 %v534, %v578
        %v591 = vadd.f32 %v535, %v579
        %v592 = vadd.f32 %v536, %v580
        %v593 = vadd.f32 %v537, %v581
        %v594 = vadd.f32 %v538, %v582
        %v595 = vadd.f32 %v539, %v583
        %v596 = vadd.f32 %v540, %v584
        %597 = vset.pattern.permute.xlu0 4
        %598 = vperm.xlu0 %597, %v377
        %v599 = vpop.permute.xlu0 %598
        %601 = vset.pattern.permute.xlu0 4
        %602 = vperm.xlu0 %601, %v378
        %v603 = vpop.permute.xlu0 %602
        %605 = vset.pattern.permute.xlu0 4
        %606 = vperm.xlu0 %605, %v379
        %v607 = vpop.permute.xlu0 %606
        %609 = vset.pattern.permute.xlu0 4
        %610 = vperm.xlu0 %609, %v380
        %v611 = vpop.permute.xlu0 %610
        %v614 = vlaneseq
        %v615 = vshrl.u32 %v614, 7
        %v616 = vsub.s32 0, %v615
        %v617 = vrot.slane %v376, %v616
        %v618 = vlaneseq
        %v619 = vshrl.u32 %v618, 7
        %v620 = vsub.s32 1, %v619
        %v621 = vrot.slane %v376, %v620
        %v622 = vlaneseq
        %v623 = vshrl.u32 %v622, 7
        %v624 = vsub.s32 2, %v623
        %v625 = vrot.slane %v376, %v624
        %v629 = vmul.f32 %v599, %v617
        %v630 = vmul.f32 %v599, %v621
        %v631 = vmul.f32 %v599, %v625
        %v632 = vmul.f32 %v603, %v617
        %v633 = vmul.f32 %v603, %v621
        %v634 = vmul.f32 %v603, %v625
        %v635 = vmul.f32 %v607, %v617
        %v636 = vmul.f32 %v607, %v621
        %v637 = vmul.f32 %v607, %v625
        %v638 = vmul.f32 %v611, %v617
        %v639 = vmul.f32 %v611, %v621
        %v640 = vmul.f32 %v611, %v625
        %v641 = vadd.f32 %v585, %v629
        %v642 = vadd.f32 %v586, %v630
        %v643 = vadd.f32 %v587, %v631
        %v644 = vadd.f32 %v588, %v632
        %v645 = vadd.f32 %v589, %v633
        %v646 = vadd.f32 %v590, %v634
        %v647 = vadd.f32 %v591, %v635
        %v648 = vadd.f32 %v592, %v636
        %v649 = vadd.f32 %v593, %v637
        %v650 = vadd.f32 %v594, %v638
        %v651 = vadd.f32 %v595, %v639
        %v652 = vadd.f32 %v596, %v640
        %v653 = vld [vmem:[%s4] sm:$0xff]
        %v654 = vld [vmem:[%s4 + $0x8] sm:$0xff]
        %v655 = vld [vmem:[%s4 + $0x10] sm:$0xff]
        %v656 = vld [vmem:[%s4 + $0x18] sm:$0xff]
        %658 = vset.pattern.permute.xlu0 0
        %659 = vperm.xlu0 %658, %v653
        %v660 = vpop.permute.xlu0 %659
        %663 = vset.pattern.permute.xlu0 0
        %664 = vperm.xlu0 %663, %v654
        %v665 = vpop.permute.xlu0 %664
        %668 = vset.pattern.permute.xlu0 0
        %669 = vperm.xlu0 %668, %v655
        %v670 = vpop.permute.xlu0 %669
        %673 = vset.pattern.permute.xlu0 0
        %674 = vperm.xlu0 %673, %v656
        %v675 = vpop.permute.xlu0 %674
        %v677 = vadd.f32 %v641, %v660
        %v678 = vadd.f32 %v642, %v660
        %v679 = vadd.f32 %v643, %v660
        %v680 = vadd.f32 %v644, %v665
        %v681 = vadd.f32 %v645, %v665
        %v682 = vadd.f32 %v646, %v665
        %v683 = vadd.f32 %v647, %v670
        %v684 = vadd.f32 %v648, %v670
        %v685 = vadd.f32 %v649, %v670
        %v686 = vadd.f32 %v650, %v675
        %v687 = vadd.f32 %v651, %v675
        %v688 = vadd.f32 %v652, %v675
        %v689 = vmul.f32 %v677, 0.2
        %v690 = vmul.f32 %v678, 0.2
        %v691 = vmul.f32 %v679, 0.2
        %v692 = vmul.f32 %v680, 0.2
        %v693 = vmul.f32 %v681, 0.2
        %v694 = vmul.f32 %v682, 0.2
        %v695 = vmul.f32 %v683, 0.2
        %v696 = vmul.f32 %v684, 0.2
        %v697 = vmul.f32 %v685, 0.2
        %v698 = vmul.f32 %v686, 0.2
        %v699 = vmul.f32 %v687, 0.2
        %v700 = vmul.f32 %v688, 0.2
        %v701 = vmax.f32 %v677, %v689
        %v702 = vmax.f32 %v678, %v690
        %v703 = vmax.f32 %v679, %v691
        %v704 = vmax.f32 %v680, %v692
        %v705 = vmax.f32 %v681, %v693
        %v706 = vmax.f32 %v682, %v694
        %v707 = vmax.f32 %v683, %v695
        %v708 = vmax.f32 %v684, %v696
        %v709 = vmax.f32 %v685, %v697
        %v710 = vmax.f32 %v686, %v698
        %v711 = vmax.f32 %v687, %v699
        %v712 = vmax.f32 %v688, %v700
        %v713 = vld [vmem:[%s5] sm:$0xff]
        %v714 = vld [vmem:[%s5 + $0x8] sm:$0xff]
        %v715 = vld [vmem:[%s5 + $0x10] sm:$0xff]
        %v716 = vld [vmem:[%s5 + $0x18] sm:$0xff]
        %v717 = vpack.c.bf16 %v714, %v713
        %v718 = vpack.c.bf16 %v716, %v715
        %v719 = vpack.c.bf16 %v704, %v701
        %v720 = vpack.c.bf16 %v705, %v702
        %v721 = vpack.c.bf16 %v706, %v703
        %v722 = vpack.c.bf16 %v710, %v707
        %v723 = vpack.c.bf16 %v711, %v708
        %v724 = vpack.c.bf16 %v712, %v709
        %v725 = vld [vmem:[%s6] sm:$0xff]
        %v726 = vld [vmem:[%s6 + $0x8] sm:$0xff]
        %v727 = vld [vmem:[%s6 + $0x10] sm:$0xff]
        %v728 = vld [vmem:[%s6 + $0x18] sm:$0xff]
        %730 = vset.pattern.permute.xlu0 0
        %731 = vperm.xlu0 %730, %v725
        %v732 = vpop.permute.xlu0 %731
        %735 = vset.pattern.permute.xlu0 0
        %736 = vperm.xlu0 %735, %v726
        %v737 = vpop.permute.xlu0 %736
        %740 = vset.pattern.permute.xlu0 0
        %741 = vperm.xlu0 %740, %v727
        %v742 = vpop.permute.xlu0 %741
        %745 = vset.pattern.permute.xlu0 0
        %746 = vperm.xlu0 %745, %v728
        %v747 = vpop.permute.xlu0 %746
        %vm749 = vcmask 261120
        %v751 = vsel %vm749, %v717, 0
        %v754 = vsel %vm749, %v718, 0
        %756 = vmatprep.subr.bf16.mxu0 %v720
        %757 = vmatpush1.bf16.msra.mxu0 %v719
        %758 = vmatprep.subr.bf16.mxu0 %v723
        %759 = vmatpush1.bf16.msra.mxu0 %v722
        %760 = vmatprep.subr.bf16.mxu0 0
        %761 = vmatpush1.bf16.msra.mxu0 0
        %762 = vmatprep.subr.bf16.mxu0 0
        %763 = vmatpush1.bf16.msra.mxu0 0
        %764 = vmatprep.subr.bf16.mxu0 0
        %765 = vmatpush1.bf16.msra.mxu0 0
        %766 = vmatprep.subr.bf16.mxu0 0
        %767 = vmatpush1.bf16.msra.mxu0 0
        %768 = vmatprep.subr.bf16.mxu0 0
        %769 = vmatpush1.bf16.msra.mxu0 0
        %770 = vmatprep.subr.bf16.mxu0 0
        %771 = vmatpush1.bf16.msra.mxu0 0
        %772 = vmatprep.subr.bf16.mxu0 0
        %773 = vmatpush1.bf16.msra.mxu0 0
        %774 = vmatprep.subr.bf16.mxu0 0
        %775 = vmatpush1.bf16.msra.mxu0 0
        %776 = vmatprep.subr.bf16.mxu0 0
        %777 = vmatpush1.bf16.msra.mxu0 0
        %778 = vmatprep.subr.bf16.mxu0 0
        %779 = vmatpush1.bf16.msra.mxu0 0
        %780 = vmatprep.subr.bf16.mxu0 0
        %781 = vmatpush1.bf16.msra.mxu0 0
        %782 = vmatprep.subr.bf16.mxu0 0
        %783 = vmatpush1.bf16.msra.mxu0 0
        %784 = vmatprep.subr.bf16.mxu0 0
        %785 = vmatpush1.bf16.msra.mxu0 0
        %786 = vmatprep.subr.bf16.mxu0 0
        %787 = vmatpush1.bf16.msra.mxu0 0
        %788 = vmatprep.mubr.bf16.mxu0 0
        %789 = vmatmul.mubr.bf16.gmra.mrb[0].mxu0 %v751
        %v790 = vpop.f32.mrb[0].mxu0
        %v791 = vadd.f32 %v732, %v790
        %v792 = vpop.f32.mrb[0].mxu0
        %v793 = vadd.f32 %v732, %v792
        %v794 = vpop.f32.mrb[0].mxu0
        %v795 = vadd.f32 %v737, %v794
        %v796 = vpop.f32.mrb[0].mxu0
        %v797 = vadd.f32 %v737, %v796
        %798 = vmatprep.mubr.bf16.mxu0 0
        %799 = vmatmul.mubr.bf16.gmra.mrb[0].mxu0 %v754
        %v800 = vpop.f32.mrb[0].mxu0
        %v801 = vadd.f32 %v742, %v800
        %v802 = vpop.f32.mrb[0].mxu0
        %v803 = vadd.f32 %v742, %v802
        %v804 = vpop.f32.mrb[0].mxu0
        %v805 = vadd.f32 %v747, %v804
        %v806 = vpop.f32.mrb[0].mxu0
        %v807 = vadd.f32 %v747, %v806
        %808 = vdwg.mxu0
        %809 = vmatprep.subr.bf16.mxu0 0
        %810 = vmatpush1.bf16.msra.mxu0 %v721
        %811 = vmatprep.subr.bf16.mxu0 0
        %812 = vmatpush1.bf16.msra.mxu0 %v724
        %813 = vmatprep.subr.bf16.mxu0 0
        %814 = vmatpush1.bf16.msra.mxu0 0
        %815 = vmatprep.subr.bf16.mxu0 0
        %816 = vmatpush1.bf16.msra.mxu0 0
        %817 = vmatprep.subr.bf16.mxu0 0
        %818 = vmatpush1.bf16.msra.mxu0 0
        %819 = vmatprep.subr.bf16.mxu0 0
        %820 = vmatpush1.bf16.msra.mxu0 0
        %821 = vmatprep.subr.bf16.mxu0 0
        %822 = vmatpush1.bf16.msra.mxu0 0
        %823 = vmatprep.subr.bf16.mxu0 0
        %824 = vmatpush1.bf16.msra.mxu0 0
        %825 = vmatprep.subr.bf16.mxu0 0
        %826 = vmatpush1.bf16.msra.mxu0 0
        %827 = vmatprep.subr.bf16.mxu0 0
        %828 = vmatpush1.bf16.msra.mxu0 0
        %829 = vmatprep.subr.bf16.mxu0 0
        %830 = vmatpush1.bf16.msra.mxu0 0
        %831 = vmatprep.subr.bf16.mxu0 0
        %832 = vmatpush1.bf16.msra.mxu0 0
        %833 = vmatprep.subr.bf16.mxu0 0
        %834 = vmatpush1.bf16.msra.mxu0 0
        %835 = vmatprep.subr.bf16.mxu0 0
        %836 = vmatpush1.bf16.msra.mxu0 0
        %837 = vmatprep.subr.bf16.mxu0 0
        %838 = vmatpush1.bf16.msra.mxu0 0
        %839 = vmatprep.subr.bf16.mxu0 0
        %840 = vmatpush1.bf16.msra.mxu0 0
        %841 = vmatprep.mubr.bf16.mxu0 0
        %842 = vmatmul.mubr.bf16.gmra.mrb[0].mxu0 %v751
        %v843 = vpop.f32.mrb[0].mxu0
        %v844 = vadd.f32 %v732, %v843
        %v845 = vpop.f32.mrb[0].mxu0
        %v846 = vpop.f32.mrb[0].mxu0
        %v847 = vadd.f32 %v737, %v846
        %v848 = vpop.f32.mrb[0].mxu0
        %849 = vmatprep.mubr.bf16.mxu0 0
        %850 = vmatmul.mubr.bf16.gmra.mrb[0].mxu0 %v754
        %v851 = vpop.f32.mrb[0].mxu0
        %v852 = vadd.f32 %v742, %v851
        %v853 = vpop.f32.mrb[0].mxu0
        %v854 = vpop.f32.mrb[0].mxu0
        %v855 = vadd.f32 %v747, %v854
        %v856 = vpop.f32.mrb[0].mxu0
        %857 = vdwg.mxu0
        %v858 = vmul.f32 %v791, 0.2
        %v859 = vmul.f32 %v793, 0.2
        %v860 = vmul.f32 %v844, 0.2
        %v861 = vmul.f32 %v795, 0.2
        %v862 = vmul.f32 %v797, 0.2
        %v863 = vmul.f32 %v847, 0.2
        %v864 = vmul.f32 %v801, 0.2
        %v865 = vmul.f32 %v803, 0.2
        %v866 = vmul.f32 %v852, 0.2
        %v867 = vmul.f32 %v805, 0.2
        %v868 = vmul.f32 %v807, 0.2
        %v869 = vmul.f32 %v855, 0.2
        %v870 = vmax.f32 %v791, %v858
        %v871 = vmax.f32 %v793, %v859
        %v872 = vmax.f32 %v844, %v860
        %v873 = vmax.f32 %v795, %v861
        %v874 = vmax.f32 %v797, %v862
        %v875 = vmax.f32 %v847, %v863
        %v876 = vmax.f32 %v801, %v864
        %v877 = vmax.f32 %v803, %v865
        %v878 = vmax.f32 %v852, %v866
        %v879 = vmax.f32 %v805, %v867
        %v880 = vmax.f32 %v807, %v868
        %v881 = vmax.f32 %v855, %v869
        %v882 = vld [vmem:[%s7] sm:$0xff]
        %v883 = vld [vmem:[%s7 + $0x8] sm:$0xff]
        %v884 = vld [vmem:[%s7 + $0x10] sm:$0xff]
        %v885 = vld [vmem:[%s7 + $0x18] sm:$0xff]
        %887 = vset.pattern.permute.xlu0 0
        %888 = vperm.xlu0 %887, %v882
        %v889 = vpop.permute.xlu0 %888
        %892 = vset.pattern.permute.xlu0 0
        %893 = vperm.xlu0 %892, %v883
        %v894 = vpop.permute.xlu0 %893
        %897 = vset.pattern.permute.xlu0 0
        %898 = vperm.xlu0 %897, %v884
        %v899 = vpop.permute.xlu0 %898
        %902 = vset.pattern.permute.xlu0 0
        %903 = vperm.xlu0 %902, %v885
        %v904 = vpop.permute.xlu0 %903
        %v906 = vmul.f32 %v870, %v889
        %v907 = vmul.f32 %v871, %v889
        %v908 = vmul.f32 %v872, %v889
        %v909 = vmul.f32 %v873, %v894
        %v910 = vmul.f32 %v874, %v894
        %v911 = vmul.f32 %v875, %v894
        %v912 = vmul.f32 %v876, %v899
        %v913 = vmul.f32 %v877, %v899
        %v914 = vmul.f32 %v878, %v899
        %v915 = vmul.f32 %v879, %v904
        %v916 = vmul.f32 %v880, %v904
        %v917 = vmul.f32 %v881, %v904
        %v918 = vadd.f32 %v906, %v909
        %v919 = vadd.f32 %v918, %v912
        %v920 = vadd.f32 %v919, %v915
        %v921 = vrot.slane %v920, 4
        %v922 = vadd.f32 %v920, %v921
        %v923 = vrot.slane %v922, 2
        %v924 = vadd.f32 %v922, %v923
        %v925 = vrot.slane %v924, 1
        %v926 = vadd.f32 %v924, %v925
        %v927 = vadd.f32 %v907, %v910
        %v928 = vadd.f32 %v927, %v913
        %v929 = vadd.f32 %v928, %v916
        %v930 = vrot.slane %v929, 4
        %v931 = vadd.f32 %v929, %v930
        %v932 = vrot.slane %v931, 2
        %v933 = vadd.f32 %v931, %v932
        %v934 = vrot.slane %v933, 1
        %v935 = vadd.f32 %v933, %v934
        %v936 = vadd.f32 %v908, %v911
        %v937 = vadd.f32 %v936, %v914
        %v938 = vadd.f32 %v937, %v917
        %v939 = vrot.slane %v938, 4
        %v940 = vadd.f32 %v938, %v939
        %v941 = vrot.slane %v940, 2
        %v942 = vadd.f32 %v940, %v941
        %v943 = vrot.slane %v942, 1
        %v944 = vadd.f32 %v942, %v943
        %v945 = vld [vmem:[#allocation3] sm:$0x1]
        %947 = vset.pattern.permute.xlu0 0
        %948 = vperm.xlu0 %947, %v945
        %v949 = vpop.permute.xlu0 %948
        %v951 = vlaneseq
        %v952 = vshrl.u32 %v951, 7
        %v953 = vsub.s32 0, %v952
        %v954 = vrot.slane %v949, %v953
        %v955 = vadd.f32 %v926, %v954
        %v956 = vadd.f32 %v935, %v954
        %v957 = vadd.f32 %v944, %v954
        %v958 = vsub.f32 0.0, %v955
        %v959 = vsub.f32 0.0, %v956
        %v960 = vsub.f32 0.0, %v957
        %v961 = vmul.f32 %v958, 1.442695
        %v962 = vpow.pop %v961
        %v963 = vmul.f32 %v959, 1.442695
        %v964 = vpow.pop %v963
        %v965 = vmul.f32 %v960, 1.442695
        %v966 = vpow.pop %v965
        %v967 = vadd.f32 %v962, 1.0
        %v968 = vadd.f32 %v964, 1.0
        %v969 = vadd.f32 %v966, 1.0
        %v970 = vrcp.pop %v967
        %v971 = vmul.f32 1.0, %v970
        %v972 = vrcp.pop %v968
        %v973 = vmul.f32 1.0, %v972
        %v974 = vrcp.pop %v969
        %v975 = vmul.f32 1.0, %v974
        %v976 = vlog2.pop %v971
        %v977 = vmul.f32 %v976, 0.6931472
        %v978 = vlog2.pop %v973
        %v979 = vmul.f32 %v978, 0.6931472
        %v980 = vlog2.pop %v975
        %v981 = vmul.f32 %v980, 0.6931472
        %v982 = vmax.f32 %v977, -100.0
        %v983 = vmax.f32 %v979, -100.0
        %v984 = vmax.f32 %v981, -100.0
        %v985 = vsub.f32 1.0, %v971
        %v986 = vsub.f32 1.0, %v973
        %v987 = vsub.f32 1.0, %v975
        %v988 = vlog2.pop %v985
        %v989 = vmul.f32 %v988, 0.6931472
        %v990 = vlog2.pop %v986
        %v991 = vmul.f32 %v990, 0.6931472
        %v992 = vlog2.pop %v987
        %v993 = vmul.f32 %v992, 0.6931472
        %v994 = vmax.f32 %v989, -100.0
        %v995 = vmax.f32 %v991, -100.0
        %v996 = vmax.f32 %v993, -100.0
        %v1000 = vcombine.low %v982, %v983
        %v1002 = vunpack.c.l.s4 1966171168
        %v1003 = vunpack.c.0.s8 %v1002
        %v1004 = vlaneseq
        %v1005 = vshrl.u32 %v1004, 7
        %v1006 = vsub.s32 %v1003, %v1005
        %v1007 = vrot.slane %v1000, %v1006
        %v1009 = vunpack.c.l.s4 1966171168
        %v1010 = vunpack.c.0.s8 %v1009
        %v1011 = vlaneseq
        %v1012 = vshrl.u32 %v1011, 7
        %v1013 = vsub.s32 %v1010, %v1012
        %v1014 = vrot.slane %v984, %v1013
        %v1015 = vcombine.low %v1007, %v1014
        %v1017 = vunpack.c.l.s4 1966171168
        %v1018 = vunpack.c.0.s8 %v1017
        %v1019 = vlaneseq
        %v1020 = vshrl.u32 %v1019, 7
        %v1021 = vsub.s32 %v1018, %v1020
        %v1022 = vrot.slane %v1015, %v1021
        %v1024 = vmul.f32 %v369, %v1022
        %v1025 = vsub.f32 1.0, %v369
        %v1029 = vcombine.low %v994, %v995
        %v1031 = vunpack.c.l.s4 1966171168
        %v1032 = vunpack.c.0.s8 %v1031
        %v1033 = vlaneseq
        %v1034 = vshrl.u32 %v1033, 7
        %v1035 = vsub.s32 %v1032, %v1034
        %v1036 = vrot.slane %v1029, %v1035
        %v1038 = vunpack.c.l.s4 1966171168
        %v1039 = vunpack.c.0.s8 %v1038
        %v1040 = vlaneseq
        %v1041 = vshrl.u32 %v1040, 7
        %v1042 = vsub.s32 %v1039, %v1041
        %v1043 = vrot.slane %v996, %v1042
        %v1044 = vcombine.low %v1036, %v1043
        %v1046 = vunpack.c.l.s4 1966171168
        %v1047 = vunpack.c.0.s8 %v1046
        %v1048 = vlaneseq
        %v1049 = vshrl.u32 %v1048, 7
        %v1050 = vsub.s32 %v1047, %v1049
        %v1051 = vrot.slane %v1044, %v1050
        %v1053 = vmul.f32 %v1025, %v1051
        %v1054 = vadd.f32 %v1024, %v1053
        %v1055 = vsub.f32 0.0, %v1054
        %s1056 = smul.u32 %s23, 384
        %v1057 = vlaneseq
        %v1058 = vand.u32 %v1057, 127
        %v1059 = vadd.s32 %v1058, 128
        %v1060 = vadd.s32 %v1058, 256
        %v1061 = vstv %s1056
        %v1062 = vadd.s32 %v1061, %v1058
        %v1063 = vadd.s32 %v1061, %v1059
        %v1064 = vadd.s32 %v1061, %v1060
        %vm1065 = vcmp.lt.s32.totalorder %v1062, 512
        %vm1066 = vcmp.lt.s32.totalorder %v1063, 512
        %vm1067 = vcmp.lt.s32.totalorder %v1064, 512
        %v1069 = vlaneseq
        %v1070 = vshrl.u32 %v1069, 7
        %v1071 = vsub.s32 0, %v1070
        %v1072 = vrot.slane %v1055, %v1071
        %v1073 = vlaneseq
        %v1074 = vshrl.u32 %v1073, 7
        %v1075 = vsub.s32 1, %v1074
        %v1076 = vrot.slane %v1055, %v1075
        %v1077 = vlaneseq
        %v1078 = vshrl.u32 %v1077, 7
        %v1079 = vsub.s32 2, %v1078
        %v1080 = vrot.slane %v1055, %v1079
        %v1084 = vsel %vm1065, %v1072, 0.0
        %v1085 = vsel %vm1066, %v1076, 0.0
        %v1086 = vsel %vm1067, %v1080, 0.0
        %v1087 = vld [vmem:[#allocation2] sm:$0x1]
        %vm1088 = vcmask 1040384
        %v1089 = vsel %vm1088, %v1084, 0.0
        %v1090 = vsel %vm1088, %v1085, 0.0
        %v1091 = vadd.f32 %v1089, %v1090
        %v1092 = vsel %vm1088, %v1086, 0.0
        %v1093 = vadd.f32 %v1091, %v1092
        %1094 = vadd.xlane.f32.xlu0 %v1093
        %v1095 = vpop.xlane.xlu0 %1094
        %v1096 = vadd.f32 %v1087, %v1095
        %vm1097 = vcmask 0
        %1098 = vst.msk [vmem:[#allocation2] sm:$0x1] %vm1097, %v1096
        %p1099 = scmp.eq.s32.totalorder %s23, 1
        // Predicated region
        $region61: #{_lambda_.1} parent=55 // pred_check
          %p1100 = pneg %p1099
        $region62: #{_lambda_.1} parent=55 // pred_check_branch
          %1102 = sbr.rel (%p1100) target = $region64
        $region63: #{_lambda_.1} parent=55 // pred_region
          %v1103 = vld [vmem:[#allocation2] sm:$0x1]
          %v1104 = vmul.f32 %v1103, 0.001953125
          %1105 = vst.msk [vmem:[#allocation4] sm:$0x1] %vm1097, %v1104
        $region64: #{_lambda_.1} parent=55 // pred_fallthru
          _
        // Predicated region
        $region65: #{_lambda_.1} parent=55 // pred_check
          %p1106 = pneg %p240
        $region66: #{_lambda_.1} parent=55 // pred_check_branch
          %1108 = sbr.rel (%p1106) target = $region68
        $region67: #{_lambda_.1} parent=55 // pred_region
          %s1110 = ssub.s32 16, 16
          %1111 = vsyncadd [#allocation5], %s1110
          %s1113 = sshll.u32 [#allocation4], 4
          %s1114 = int_to_ptr.vmem [resolvable:$true] %s1113
          %1116 = dma.vmem_to_hbm [thread:$0]  %s1114, 16, %s9, [#allocation5]
        $region68: #{_lambda_.1} parent=55 // pred_fallthru
          _
        // Predicated region
        $region69: #{_lambda_.1} parent=55 // pred_check
          %p1117 = pneg %p240
        $region70: #{_lambda_.1} parent=55 // pred_check_branch
          %1119 = sbr.rel (%p1117) target = $region72
        $region71: #{_lambda_.1} parent=55 // pred_region
          %1120 = dma.done [#allocation5], 16
        $region72: #{_lambda_.1} parent=55 // pred_fallthru
          _
      $region56: #{_lambda_.1} parent=5 // pred_fallthru
        _
      %p1121 = scmp.le.s32.totalorder 2, %s18
      // Predicated region
      $region73: #{_lambda_.1} parent=5 // pred_check
        %p1122 = pneg %p1121
      $region74: #{_lambda_.1} parent=5 // pred_check_branch
        %1124 = sbr.rel (%p1122) target = $region76
      $region75: #{_lambda_.1} parent=5 // pred_region
        %s1125 = ssub.s32 %s18, 2
      $region76: #{_lambda_.1} parent=5 // pred_fallthru
        _
    $region6: #{_lambda_.1} parent=1 // loop_footer
      %s22 = sadd.s32 1, %s18
    $region7: #{_lambda_.1} parent=1 // loop_footer_branch
      %17 = sbr.rel target = $region3
    $region8: #{_lambda_.1} parent=1 // loop_exit
      _
    %1126 = vsyncpa [#allocation5], 1
    %s1127 = scalar_lea.sflag [#allocation5], 1
    %1128 = vsyncpa %s1127, 1

</llo_original>
